<compile_context>
chip_gen: v6e
topology: v6e:2x2x1
jax: 0.10.0
libtpu: 0.0.40
codegen_flags: <defaults>
</compile_context>

<pallas_src>
import functools

import jax
import jax.numpy as jnp
from jax.experimental import pallas as pl
from jax.experimental.pallas import tpu as pltpu


def _autoencoder_kernel(x_ref,
                        w1_ref, b1_ref,     # Linear(input_dim, 4), weights [in, out]
                        w23_ref, b23_ref,   # fused Linear(4,2) @ Linear(2,4) -> [4,4]
                        w4_ref, b4_ref,     # Linear(4, input_dim)
                        out_ref,
                        *, decoder_on_vpu=False):
    # Per-tile cast of x to the matmul dtype (cheap VPU op on data already in
    # VMEM).  Doing this here instead of the wrapper avoids a separate XLA op
    # that would re-read all of x from HBM and write a full converted copy.
    x = x_ref[...].astype(w1_ref.dtype)

    # Encoder first layer + ReLU (MXU matmul, f32 accumulation; biases in f32).
    h1 = jnp.dot(x, w1_ref[...], preferred_element_type=jnp.float32)
    h1 = jnp.maximum(h1 + b1_ref[...], 0.0)

    # Fused Linear(4,2) -> Linear(2,4) (no nonlinearity between) + ReLU.
    # In bf16 mode both operands are bf16 (single-pass MXU), acc in f32.
    h2 = jnp.dot(h1.astype(w23_ref.dtype), w23_ref[...],
                 preferred_element_type=jnp.float32)
    h2 = jnp.maximum(h2 + b23_ref[...], 0.0)

    if decoder_on_vpu:
        # K=4 contraction as 4 broadcast-FMAs on the VPU.  Use only if v7x
        # profiling shows the decoder's MXU push on the critical path; on
        # v5e/v6e the matmul is hidden under HBM time.
        y = b4_ref[...].astype(jnp.float32)
        for j in range(4):
            y = y + h2[:, j:j + 1] * w4_ref[j:j + 1, :].astype(jnp.float32)
    else:
        y = jnp.dot(h2.astype(w4_ref.dtype), w4_ref[...],
                    preferred_element_type=jnp.float32) + b4_ref[...]

    out_ref[...] = y.astype(out_ref.dtype)


def _vmem_budget_bytes():
    """Generation-aware scoped-VMEM limit for this kernel.

    ~70% of the core's physical VMEM, capped at 96 MiB:
      v5e/v6e (128 MiB/core) -> ~90 MiB, v7x (64 MiB/core) -> ~44 MiB.
    Falls back to the v7x-sized budget if the query is unavailable.
    """
    try:
        cap = pltpu.get_tpu_info().vmem_capacity_bytes
    except Exception:
        cap = 64 * 1024 * 1024
    return max(16 * 1024 * 1024, min(96 * 1024 * 1024, int(cap * 0.70)))


def _pick_block_batch(batch, input_dim, x_bytes, out_bytes, w_bytes,
                      sublane, budget):
    """Rows per grid step, sized from the VMEM budget (no arbitrary cap)."""
    # Streamed, double-buffered tiles per step: 2x (TB, D) of x + 2x (TB, D)
    # of out.  Resident weights (~9*D elems + small) counted at 2x for margin.
    weight_bytes = 2 * (9 * input_dim + 64) * max(w_bytes, 4)
    usable = max(0, int(budget * 0.70) - weight_bytes)
    per_row = 2 * input_dim * (x_bytes + out_bytes)
    tb = usable // max(1, per_row)

    # Keep >= 4 grid steps when the batch allows it: v7x's two TensorCores
    # both get work ("parallel" axis) and the DMA pipeline stays busy.
    min_steps = 4
    if batch >= min_steps * sublane:
        tb = min(tb, -(-batch // min_steps))

    if tb >= batch:
        return int(batch)  # single full-extent block (allowed for any batch)
    tb = max(sublane, (tb // sublane) * sublane)
    return int(tb)


def autoencoder_forward(x, params, *, io_dtype=None, block_batch=None,
                        input_buffers=None, decoder_on_vpu=False):
    """Autoencoder forward pass.  x: [batch, input_dim].

    io_dtype: dtype of the HBM-facing weights and the *output* (x is never
      cast in the wrapper; the kernel casts each streamed tile in VMEM).
      Accumulation is always f32.
    block_batch: batch rows per grid step (auto-derived from VMEM if None).
    input_buffers: optional pipeline depth for the streamed x spec (e.g. 3);
      only worth it if a trace shows input-DMA gaps at step boundaries.
    decoder_on_vpu: run the K=4 decoder contraction as VPU broadcast-FMAs.
    """
    batch, input_dim = x.shape
    out_dtype = jnp.dtype(io_dtype) if io_dtype is not None else jnp.dtype(x.dtype)
    compute_dtype = out_dtype  # matmul operand dtype (weights + in-kernel x cast)

    # Algebraic fusion of the two middle linears (exact in real arithmetic):
    #   (h1 @ w2 + b2) @ w3 + b3 == h1 @ (w2 @ w3) + (b2 @ w3 + b3)
    # NOTE: f32 rounding differs negligibly from the unfused PyTorch graph.
    w2 = params["w2"].astype(jnp.float32)
    w3 = params["w3"].astype(jnp.float32)
    w23 = (w2 @ w3).astype(compute_dtype)                               # [4, 4]
    b23 = params["b2"].astype(jnp.float32) @ w3 + params["b3"].astype(jnp.float32)

    w1 = params["w1"].astype(compute_dtype)
    w4 = params["w4"].astype(compute_dtype)
    b1 = params["b1"].astype(jnp.float32)
    b4 = params["b4"].astype(jnp.float32)

    # bf16 tiles want (16, 128) native tiling -> TB multiple of 16.
    x_bytes = jnp.dtype(x.dtype).itemsize
    sublane = 16 if (x_bytes == 2 or out_dtype.itemsize == 2) else 8
    budget = _vmem_budget_bytes()
    tb = block_batch or _pick_block_batch(
        batch, input_dim, x_bytes, out_dtype.itemsize, compute_dtype.itemsize,
        sublane, budget)
    grid = (pl.cdiv(batch, tb),)

    const = lambda i: (0, 0)  # weights/biases: same block every step -> resident
    x_spec_kwargs = {}
    if input_buffers is not None and input_buffers != 2:
        x_spec_kwargs["pipeline_mode"] = pl.Buffered(input_buffers)

    in_specs = [
        pl.BlockSpec((tb, input_dim), lambda i: (i, 0), **x_spec_kwargs),  # x stream
        pl.BlockSpec((input_dim, 4), const),               # w1
        pl.BlockSpec((1, 4), const),                       # b1 (f32)
        pl.BlockSpec((4, 4), const),                       # w23 (fused)
        pl.BlockSpec((1, 4), const),                       # b23 (fused, f32)
        pl.BlockSpec((4, input_dim), const),               # w4
        pl.BlockSpec((1, input_dim), const),               # b4 (f32)
    ]
    out_spec = pl.BlockSpec((tb, input_dim), lambda i: (i, 0))

    # TODO(synk): for very large input_dim (w1/w4 no longer VMEM-resident) add
    # a second grid axis over the feature dim ("arbitrary" reduction tiles for
    # w1 with a (TB, 4) f32 accumulator, "parallel" column tiles of w4/output).
    kernel = functools.partial(_autoencoder_kernel, decoder_on_vpu=decoder_on_vpu)
    return pl.pallas_call(
        kernel,
        out_shape=jax.ShapeDtypeStruct((batch, input_dim), out_dtype),
        grid=grid,
        in_specs=in_specs,
        out_specs=out_spec,
        compiler_params=pltpu.CompilerParams(
            dimension_semantics=("parallel",),   # v7x: shard batch tiles over 2 TCs
            vmem_limit_bytes=int(budget),
        ),
    )(x, w1, b1, w23, b23, w4, b4)


def init_params(key, input_dim):
    """PyTorch nn.Linear-style init; weights stored as [in, out], bias [1, out]."""
    ks = jax.random.split(key, 8)

    def linear(kw, kb, fan_in, fan_out):
        bound = 1.0 / jnp.sqrt(jnp.float32(fan_in))
        w = jax.random.uniform(kw, (fan_in, fan_out), jnp.float32, -bound, bound)
        b = jax.random.uniform(kb, (1, fan_out), jnp.float32, -bound, bound)
        return w, b

    w1, b1 = linear(ks[0], ks[1], input_dim, 4)
    w2, b2 = linear(ks[2], ks[3], 4, 2)
    w3, b3 = linear(ks[4], ks[5], 2, 4)
    w4, b4 = linear(ks[6], ks[7], 4, input_dim)
    return {"w1": w1, "b1": b1, "w2": w2, "b2": b2,
            "w3": w3, "b3": b3, "w4": w4, "b4": b4}


def autoencoder_reference(x, p):
    """Unfused f32 reference matching the PyTorch module exactly."""
    h1 = jnp.maximum(x @ p["w1"] + p["b1"], 0.0)
    z = h1 @ p["w2"] + p["b2"]
    h2 = jnp.maximum(z @ p["w3"] + p["b3"], 0.0)
    return h2 @ p["w4"] + p["b4"]


if __name__ == "__main__":
    key = jax.random.PRNGKey(0)
    k_x, k_p = jax.random.split(key)

    # Main case: lane-dense output (input_dim multiple of 128), batch tiled.
    batch, input_dim = 512, 128
    x = jax.random.normal(k_x, (batch, input_dim), jnp.float32)
    params = init_params(k_p, input_dim)
    ref = autoencoder_reference(x, params)

    # f32 path with explicit batch tiling -> 4-step pipelined grid.
    out = jax.block_until_ready(
        autoencoder_forward(x, params, io_dtype=jnp.float32, block_batch=128))
    assert out.shape == (batch, input_dim)
    assert jnp.allclose(out, ref, atol=1e-4, rtol=1e-4), "f32 mismatch vs reference"

    # bf16 I/O path: weights + output bf16 in HBM, x stays f32 and is cast
    # per-tile inside the kernel; f32 accumulation throughout.
    out_bf = jax.block_until_ready(
        autoencoder_forward(x, params, io_dtype=jnp.bfloat16))
    assert out_bf.dtype == jnp.bfloat16
    assert jnp.allclose(out_bf.astype(jnp.float32), ref, atol=6e-2, rtol=6e-2), \
        "bf16 mismatch vs reference"

    # Small, non-128-aligned shape (masked-store path), auto tiling.
    b_s, d_s = 8, 16
    x_s = jax.random.normal(jax.random.PRNGKey(1), (b_s, d_s), jnp.float32)
    p_s = init_params(jax.random.PRNGKey(2), d_s)
    out_s = jax.block_until_ready(autoencoder_forward(x_s, p_s))
    assert jnp.allclose(out_s, autoencoder_reference(x_s, p_s),
                        atol=1e-4, rtol=1e-4), "small-shape mismatch vs reference"

    # VPU-decoder variant (v7x fallback path) sanity check at small shape.
    out_v = jax.block_until_ready(
        autoencoder_forward(x_s, p_s, decoder_on_vpu=True))
    assert jnp.allclose(out_v, autoencoder_reference(x_s, p_s),
                        atol=1e-4, rtol=1e-4), "vpu-decoder mismatch vs reference"

    print("KERNEL_OK")
</pallas_src>

<mosaic_0001>
module attributes {stable_mosaic.version = 11 : i64} {
  func.func @_autoencoder_kernel(%arg0: i32, %arg1: memref<128x128xf32, #tpu.memory_space<vmem>>, %arg2: memref<128x4xf32, #tpu.memory_space<vmem>>, %arg3: memref<1x4xf32, #tpu.memory_space<vmem>>, %arg4: memref<4x4xf32, #tpu.memory_space<vmem>>, %arg5: memref<1x4xf32, #tpu.memory_space<vmem>>, %arg6: memref<4x128xf32, #tpu.memory_space<vmem>>, %arg7: memref<1x128xf32, #tpu.memory_space<vmem>>, %arg8: memref<128x128xf32, #tpu.memory_space<vmem>>) attributes {dimension_semantics = [#tpu.dimension_semantics<parallel>], iteration_bounds = array<i64: 4>, scalar_prefetch = 0 : i64, scratch_operands = 0 : i64, tpu.core_type = #tpu.core_type<tc>, window_params = [{transform_indices = @transform_0, window_bounds = array<i64: 128, 128>}, {pipeline_mode = #tpu.pipeline_mode<synchronous>, transform_indices = @transform_1, window_bounds = array<i64: 128, 4>}, {pipeline_mode = #tpu.pipeline_mode<synchronous>, transform_indices = @transform_2, window_bounds = array<i64: 1, 4>}, {pipeline_mode = #tpu.pipeline_mode<synchronous>, transform_indices = @transform_3, window_bounds = array<i64: 4, 4>}, {pipeline_mode = #tpu.pipeline_mode<synchronous>, transform_indices = @transform_4, window_bounds = array<i64: 1, 4>}, {pipeline_mode = #tpu.pipeline_mode<synchronous>, transform_indices = @transform_5, window_bounds = array<i64: 4, 128>}, {pipeline_mode = #tpu.pipeline_mode<synchronous>, transform_indices = @transform_6, window_bounds = array<i64: 1, 128>}, {transform_indices = @transform_7, window_bounds = array<i64: 128, 128>}]} {
    %c0 = arith.constant 0 : index
    %c0_0 = arith.constant 0 : index
    %0 = vector.load %arg1[%c0, %c0_0] : memref<128x128xf32, #tpu.memory_space<vmem>>, vector<128x128xf32>
    %c0_1 = arith.constant 0 : index
    %c0_2 = arith.constant 0 : index
    %1 = vector.load %arg2[%c0_1, %c0_2] : memref<128x4xf32, #tpu.memory_space<vmem>>, vector<128x4xf32>
    %cst = arith.constant dense<0.000000e+00> : vector<128x4xf32>
    %2 = tpu.matmul %0, %1, %cst {dimension_numbers = #tpu.dot_dimension_numbers<[1], [0], [0], [1], [0, 0, 1, 1], [], []>} : vector<128x128xf32>, vector<128x4xf32>, vector<128x4xf32> -> vector<128x4xf32>
    %c0_3 = arith.constant 0 : index
    %c0_4 = arith.constant 0 : index
    %3 = vector.load %arg3[%c0_3, %c0_4] : memref<1x4xf32, #tpu.memory_space<vmem>>, vector<1x4xf32>
    %4 = vector.broadcast %3 : vector<1x4xf32> to vector<128x4xf32>
    %5 = arith.addf %2, %4 : vector<128x4xf32>
    %cst_5 = arith.constant 0.000000e+00 : f32
    %6 = vector.broadcast %cst_5 : f32 to vector<128x4xf32>
    %7 = arith.maximumf %5, %6 : vector<128x4xf32>
    %c0_6 = arith.constant 0 : index
    %c0_7 = arith.constant 0 : index
    %8 = vector.load %arg4[%c0_6, %c0_7] : memref<4x4xf32, #tpu.memory_space<vmem>>, vector<4x4xf32>
    %cst_8 = arith.constant dense<0.000000e+00> : vector<128x4xf32>
    %9 = tpu.matmul %7, %8, %cst_8 {dimension_numbers = #tpu.dot_dimension_numbers<[1], [0], [0], [1], [0, 0, 1, 1], [], []>} : vector<128x4xf32>, vector<4x4xf32>, vector<128x4xf32> -> vector<128x4xf32>
    %c0_9 = arith.constant 0 : index
    %c0_10 = arith.constant 0 : index
    %10 = vector.load %arg5[%c0_9, %c0_10] : memref<1x4xf32, #tpu.memory_space<vmem>>, vector<1x4xf32>
    %11 = vector.broadcast %10 : vector<1x4xf32> to vector<128x4xf32>
    %12 = arith.addf %9, %11 : vector<128x4xf32>
    %cst_11 = arith.constant 0.000000e+00 : f32
    %13 = vector.broadcast %cst_11 : f32 to vector<128x4xf32>
    %14 = arith.maximumf %12, %13 : vector<128x4xf32>
    %c0_12 = arith.constant 0 : index
    %c0_13 = arith.constant 0 : index
    %15 = vector.load %arg6[%c0_12, %c0_13] : memref<4x128xf32, #tpu.memory_space<vmem>>, vector<4x128xf32>
    %cst_14 = arith.constant dense<0.000000e+00> : vector<128x128xf32>
    %16 = tpu.matmul %14, %15, %cst_14 {dimension_numbers = #tpu.dot_dimension_numbers<[1], [0], [0], [1], [0, 0, 1, 1], [], []>} : vector<128x4xf32>, vector<4x128xf32>, vector<128x128xf32> -> vector<128x128xf32>
    %c0_15 = arith.constant 0 : index
    %c0_16 = arith.constant 0 : index
    %17 = vector.load %arg7[%c0_15, %c0_16] : memref<1x128xf32, #tpu.memory_space<vmem>>, vector<1x128xf32>
    %18 = vector.broadcast %17 : vector<1x128xf32> to vector<128x128xf32>
    %19 = arith.addf %16, %18 : vector<128x128xf32>
    %c0_17 = arith.constant 0 : index
    %c0_18 = arith.constant 0 : index
    %20 = vector.load %arg8[%c0_17, %c0_18] : memref<128x128xf32, #tpu.memory_space<vmem>>, vector<128x128xf32>
    tpu.vector_store %arg8[%c0_17, %c0_18], %19 {strides = array<i32>} : memref<128x128xf32, #tpu.memory_space<vmem>>, vector<128x128xf32>,
    return
  }
  func.func @transform_0(%arg0: i32) -> (i32, i32) {
    %c0_i32 = arith.constant 0 : i32
    %c0_i32_0 = arith.constant 0 : i32
    return %arg0, %c0_i32 : i32, i32
  }
  func.func @transform_1(%arg0: i32) -> (i32, i32) {
    %c0_i32 = arith.constant 0 : i32
    %c0_i32_0 = arith.constant 0 : i32
    %c0_i32_1 = arith.constant 0 : i32
    return %c0_i32, %c0_i32_0 : i32, i32
  }
  func.func @transform_2(%arg0: i32) -> (i32, i32) {
    %c0_i32 = arith.constant 0 : i32
    %c0_i32_0 = arith.constant 0 : i32
    %c0_i32_1 = arith.constant 0 : i32
    return %c0_i32, %c0_i32_0 : i32, i32
  }
  func.func @transform_3(%arg0: i32) -> (i32, i32) {
    %c0_i32 = arith.constant 0 : i32
    %c0_i32_0 = arith.constant 0 : i32
    %c0_i32_1 = arith.constant 0 : i32
    return %c0_i32, %c0_i32_0 : i32, i32
  }
  func.func @transform_4(%arg0: i32) -> (i32, i32) {
    %c0_i32 = arith.constant 0 : i32
    %c0_i32_0 = arith.constant 0 : i32
    %c0_i32_1 = arith.constant 0 : i32
    return %c0_i32, %c0_i32_0 : i32, i32
  }
  func.func @transform_5(%arg0: i32) -> (i32, i32) {
    %c0_i32 = arith.constant 0 : i32
    %c0_i32_0 = arith.constant 0 : i32
    %c0_i32_1 = arith.constant 0 : i32
    return %c0_i32, %c0_i32_0 : i32, i32
  }
  func.func @transform_6(%arg0: i32) -> (i32, i32) {
    %c0_i32 = arith.constant 0 : i32
    %c0_i32_0 = arith.constant 0 : i32
    %c0_i32_1 = arith.constant 0 : i32
    return %c0_i32, %c0_i32_0 : i32, i32
  }
  func.func @transform_7(%arg0: i32) -> (i32, i32) {
    %c0_i32 = arith.constant 0 : i32
    %c0_i32_0 = arith.constant 0 : i32
    return %arg0, %c0_i32 : i32, i32
  }
}

</mosaic_0001>

<llo_original>
// kernel: tpu_custom_call.1
$region0: #{tpu_custom_call.1}
  #allocation0 [shape = 'u32[]', space=smem, size = 0x4, offset = 0x4, fixed_abs, tag = 'smem constant byte address 0x4 - core index']
  #allocation1 [shape = 'u32[144,128]{1,0:T(1,128)}', space=vmem, size = 0x12000, scoped, tag = 'internal scratch']
  %s0 = inlined_call_operand.hbm [shape: f32[512,128], index: 0, kind: input, shape index: {}]
  %s1 = inlined_call_operand.vmem [shape: f32[128,4], index: 1, kind: input, shape index: {}]
  %s2 = inlined_call_operand.vmem [shape: f32[1,4], index: 2, kind: input, shape index: {}]
  %s3 = inlined_call_operand.vmem [shape: f32[4,4], index: 3, kind: input, shape index: {}]
  %s4 = inlined_call_operand.vmem [shape: f32[1,4], index: 4, kind: input, shape index: {}]
  %s5 = inlined_call_operand.vmem [shape: f32[4,128], index: 5, kind: input, shape index: {}]
  %s6 = inlined_call_operand.vmem [shape: f32[1,128], index: 6, kind: input, shape index: {}]
  %s7 = inlined_call_operand.hbm [shape: f32[512,128], index: 7, kind: output, shape index: {}]
  %s8 = sld [smem:[#allocation0]]
  $region65: #{tpu_custom_call.1} parent=0
    _
  %s10 = ssub.s32 1, %s8
  %s11 = scalar_select 0, %s10, %s8
  $region1: #{tpu_custom_call.1} parent=0
    #allocation2 [shape = 'u8[131072]{0}', space=vmem, size = 0x20000, scoped, tag = 'input window, operand 0']
    #allocation3 [shape = 's32[2]{0}', space=sflag, size = 0x8, scoped, tag = 'scoped memory for tpu_custom_call.1']
    #allocation4 [shape = 's32[2]{0}', space=sflag, size = 0x8, scoped, tag = 'scoped memory for tpu_custom_call.1']
    #allocation5 [shape = 'u8[131072]{0}', space=vmem, size = 0x20000, scoped, tag = 'output window, operand 0']
    %12 = vsyncpa [#allocation3], 0
    %s13 = scalar_lea.sflag [#allocation3], 1
    %14 = vsyncpa %s13, 0
    %15 = vsyncpa [#allocation4], 0
    %s16 = scalar_lea.sflag [#allocation4], 1
    %17 = vsyncpa %s16, 0
    loop: start=0, step=1, limit=6
    $region2: #{tpu_custom_call.1} parent=1 // loop_pre_header
      _
    $region3: #{tpu_custom_call.1} parent=1 // loop_header
      %s19 = sphi 0, %s23
      %p20 = scmp.ge.s32.totalorder %s19, 6
      %s29 = sphi 0, %s31
      %s32 = sphi 0, %s29
      %s33 = sphi 0, %s32
      %s49 = sphi 0, %s33
      %s53 = sphi 0, %s53
      %s55 = sphi 0, %s53
      %s56 = sphi 0, %s55
      %s70 = sphi 0, %s56
      %s74 = sphi 0, %s74
      %s76 = sphi 0, %s74
      %s77 = sphi 0, %s76
      %s91 = sphi 0, %s77
      %s95 = sphi 0, %s95
      %s97 = sphi 0, %s95
      %s98 = sphi 0, %s97
      %s112 = sphi 0, %s98
      %s116 = sphi 0, %s116
      %s118 = sphi 0, %s116
      %s119 = sphi 0, %s118
      %s133 = sphi 0, %s119
      %s137 = sphi 0, %s137
      %s139 = sphi 0, %s137
      %s140 = sphi 0, %s139
      %s154 = sphi 0, %s140
      %s158 = sphi 0, %s158
      %s160 = sphi 0, %s158
      %s161 = sphi 0, %s160
      %s175 = sphi 0, %s161
      %s181 = sphi 0, %s183
      %s184 = sphi 0, %s181
      %s185 = sphi 0, %s184
      %s201 = sphi 0, %s185
    $region4: #{tpu_custom_call.1} parent=1 // loop_header_branch
      %22 = sbr.rel (%p20) target = $region8
    $region5: #{tpu_custom_call.1} parent=1 // loop_body
      %s24 = ssub.s32 %s19, 1
      %s25 = ssub.s32 %s19, 2
      %s26 = sadd.s32 %s19, 1
      %s27 = ssub.s32 %s19, %s26
      %p28 = scmp.eq.s32.totalorder %s27, 0
      %s30 = sadd.s32 %s29, 1
      %s31 = scalar_select %p28, %s29, %s30
      %p34 = pneg %p28
      %p35 = scmp.eq.s32.totalorder %s19, 3
      %p36 = por %p34, %p35
      %p37 = scmp.ne.s32.totalorder %s29, %s32
      %p38 = scmp.eq.s32.totalorder %s19, 0
      %p39 = por %p37, %p38
      %p40 = scmp.ne.s32.totalorder %s29, %s32
      %p41 = scmp.eq.s32.totalorder %s24, 3
      %p42 = por %p40, %p41
      %p43 = scmp.ne.s32.totalorder %s32, %s33
      %p44 = scmp.eq.s32.totalorder %s24, 0
      %p45 = por %p43, %p44
      %p46 = scmp.ne.s32.totalorder %s32, %s33
      %p47 = scmp.eq.s32.totalorder %s25, 3
      %p48 = por %p46, %p47
      %p50 = scmp.ne.s32.totalorder %s33, %s49
      %p51 = scmp.eq.s32.totalorder %s25, 0
      %p52 = por %p50, %p51
      %s54 = sadd.s32 %s53, 1
      %p57 = scmp.eq.s32.totalorder %s19, 3
      %p58 = scmp.ne.s32.totalorder %s53, %s55
      %p59 = scmp.eq.s32.totalorder %s19, 0
      %p60 = por %p58, %p59
      %p61 = scmp.ne.s32.totalorder %s53, %s55
      %p62 = scmp.eq.s32.totalorder %s24, 3
      %p63 = por %p61, %p62
      %p64 = scmp.ne.s32.totalorder %s55, %s56
      %p65 = scmp.eq.s32.totalorder %s24, 0
      %p66 = por %p64, %p65
      %p67 = scmp.ne.s32.totalorder %s55, %s56
      %p68 = scmp.eq.s32.totalorder %s25, 3
      %p69 = por %p67, %p68
      %p71 = scmp.ne.s32.totalorder %s56, %s70
      %p72 = scmp.eq.s32.totalorder %s25, 0
      %p73 = por %p71, %p72
      %s75 = sadd.s32 %s74, 1
      %p78 = scmp.eq.s32.totalorder %s19, 3
      %p79 = scmp.ne.s32.totalorder %s74, %s76
      %p80 = scmp.eq.s32.totalorder %s19, 0
      %p81 = por %p79, %p80
      %p82 = scmp.ne.s32.totalorder %s74, %s76
      %p83 = scmp.eq.s32.totalorder %s24, 3
      %p84 = por %p82, %p83
      %p85 = scmp.ne.s32.totalorder %s76, %s77
      %p86 = scmp.eq.s32.totalorder %s24, 0
      %p87 = por %p85, %p86
      %p88 = scmp.ne.s32.totalorder %s76, %s77
      %p89 = scmp.eq.s32.totalorder %s25, 3
      %p90 = por %p88, %p89
      %p92 = scmp.ne.s32.totalorder %s77, %s91
      %p93 = scmp.eq.s32.totalorder %s25, 0
      %p94 = por %p92, %p93
      %s96 = sadd.s32 %s95, 1
      %p99 = scmp.eq.s32.totalorder %s19, 3
      %p100 = scmp.ne.s32.totalorder %s95, %s97
      %p101 = scmp.eq.s32.totalorder %s19, 0
      %p102 = por %p100, %p101
      %p103 = scmp.ne.s32.totalorder %s95, %s97
      %p104 = scmp.eq.s32.totalorder %s24, 3
      %p105 = por %p103, %p104
      %p106 = scmp.ne.s32.totalorder %s97, %s98
      %p107 = scmp.eq.s32.totalorder %s24, 0
      %p108 = por %p106, %p107
      %p109 = scmp.ne.s32.totalorder %s97, %s98
      %p110 = scmp.eq.s32.totalorder %s25, 3
      %p111 = por %p109, %p110
      %p113 = scmp.ne.s32.totalorder %s98, %s112
      %p114 = scmp.eq.s32.totalorder %s25, 0
      %p115 = por %p113, %p114
      %s117 = sadd.s32 %s116, 1
      %p120 = scmp.eq.s32.totalorder %s19, 3
      %p121 = scmp.ne.s32.totalorder %s116, %s118
      %p122 = scmp.eq.s32.totalorder %s19, 0
      %p123 = por %p121, %p122
      %p124 = scmp.ne.s32.totalorder %s116, %s118
      %p125 = scmp.eq.s32.totalorder %s24, 3
      %p126 = por %p124, %p125
      %p127 = scmp.ne.s32.totalorder %s118, %s119
      %p128 = scmp.eq.s32.totalorder %s24, 0
      %p129 = por %p127, %p128
      %p130 = scmp.ne.s32.totalorder %s118, %s119
      %p131 = scmp.eq.s32.totalorder %s25, 3
      %p132 = por %p130, %p131
      %p134 = scmp.ne.s32.totalorder %s119, %s133
      %p135 = scmp.eq.s32.totalorder %s25, 0
      %p136 = por %p134, %p135
      %s138 = sadd.s32 %s137, 1
      %p141 = scmp.eq.s32.totalorder %s19, 3
      %p142 = scmp.ne.s32.totalorder %s137, %s139
      %p143 = scmp.eq.s32.totalorder %s19, 0
      %p144 = por %p142, %p143
      %p145 = scmp.ne.s32.totalorder %s137, %s139
      %p146 = scmp.eq.s32.totalorder %s24, 3
      %p147 = por %p145, %p146
      %p148 = scmp.ne.s32.totalorder %s139, %s140
      %p149 = scmp.eq.s32.totalorder %s24, 0
      %p150 = por %p148, %p149
      %p151 = scmp.ne.s32.totalorder %s139, %s140
      %p152 = scmp.eq.s32.totalorder %s25, 3
      %p153 = por %p151, %p152
      %p155 = scmp.ne.s32.totalorder %s140, %s154
      %p156 = scmp.eq.s32.totalorder %s25, 0
      %p157 = por %p155, %p156
      %s159 = sadd.s32 %s158, 1
      %p162 = scmp.eq.s32.totalorder %s19, 3
      %p163 = scmp.ne.s32.totalorder %s158, %s160
      %p164 = scmp.eq.s32.totalorder %s19, 0
      %p165 = por %p163, %p164
      %p166 = scmp.ne.s32.totalorder %s158, %s160
      %p167 = scmp.eq.s32.totalorder %s24, 3
      %p168 = por %p166, %p167
      %p169 = scmp.ne.s32.totalorder %s160, %s161
      %p170 = scmp.eq.s32.totalorder %s24, 0
      %p171 = por %p169, %p170
      %p172 = scmp.ne.s32.totalorder %s160, %s161
      %p173 = scmp.eq.s32.totalorder %s25, 3
      %p174 = por %p172, %p173
      %p176 = scmp.ne.s32.totalorder %s161, %s175
      %p177 = scmp.eq.s32.totalorder %s25, 0
      %p178 = por %p176, %p177
      %s179 = ssub.s32 %s19, %s26
      %p180 = scmp.eq.s32.totalorder %s179, 0
      %s182 = sadd.s32 %s181, 1
      %s183 = scalar_select %p180, %s181, %s182
      %p186 = pneg %p180
      %p187 = scmp.eq.s32.totalorder %s19, 3
      %p188 = por %p186, %p187
      %p189 = scmp.ne.s32.totalorder %s181, %s184
      %p190 = scmp.eq.s32.totalorder %s19, 0
      %p191 = por %p189, %p190
      %p192 = scmp.ne.s32.totalorder %s181, %s184
      %p193 = scmp.eq.s32.totalorder %s24, 3
      %p194 = por %p192, %p193
      %p195 = scmp.ne.s32.totalorder %s184, %s185
      %p196 = scmp.eq.s32.totalorder %s24, 0
      %p197 = por %p195, %p196
      %p198 = scmp.ne.s32.totalorder %s184, %s185
      %p199 = scmp.eq.s32.totalorder %s25, 3
      %p200 = por %p198, %p199
      %p202 = scmp.ne.s32.totalorder %s185, %s201
      %p203 = scmp.eq.s32.totalorder %s25, 0
      %p204 = por %p202, %p203
      %p205 = scmp.le.s32.totalorder 1, %s19
      %p206 = scmp.lt.s32.totalorder %s19, 5
      %p207 = pnand %p205, %p206
      %p208 = pneg %p207
      // Predicated region
      $region9: #{tpu_custom_call.1} parent=5 // pred_check
        _
      $region10: #{tpu_custom_call.1} parent=5 // pred_check_branch
        %210 = sbr.rel (%p207) target = $region12
      $region11: #{tpu_custom_call.1} parent=5 // pred_region
        %s211 = ssub.s32 %s19, 1
        // Predicated region
        $region13: #{tpu_custom_call.1} parent=11 // pred_check
          %p212 = pneg %p66
        $region14: #{tpu_custom_call.1} parent=11 // pred_check_branch
          %214 = sbr.rel (%p212) target = $region16
        $region15: #{tpu_custom_call.1} parent=11 // pred_region
          _
        $region16: #{tpu_custom_call.1} parent=11 // pred_fallthru
          _
        // Predicated region
        $region17: #{tpu_custom_call.1} parent=11 // pred_check
          %p215 = pneg %p87
        $region18: #{tpu_custom_call.1} parent=11 // pred_check_branch
          %217 = sbr.rel (%p215) target = $region20
        $region19: #{tpu_custom_call.1} parent=11 // pred_region
          _
        $region20: #{tpu_custom_call.1} parent=11 // pred_fallthru
          _
        // Predicated region
        $region21: #{tpu_custom_call.1} parent=11 // pred_check
          %p218 = pneg %p108
        $region22: #{tpu_custom_call.1} parent=11 // pred_check_branch
          %220 = sbr.rel (%p218) target = $region24
        $region23: #{tpu_custom_call.1} parent=11 // pred_region
          _
        $region24: #{tpu_custom_call.1} parent=11 // pred_fallthru
          _
        // Predicated region
        $region25: #{tpu_custom_call.1} parent=11 // pred_check
          %p221 = pneg %p129
        $region26: #{tpu_custom_call.1} parent=11 // pred_check_branch
          %223 = sbr.rel (%p221) target = $region28
        $region27: #{tpu_custom_call.1} parent=11 // pred_region
          _
        $region28: #{tpu_custom_call.1} parent=11 // pred_fallthru
          _
        // Predicated region
        $region29: #{tpu_custom_call.1} parent=11 // pred_check
          %p224 = pneg %p150
        $region30: #{tpu_custom_call.1} parent=11 // pred_check_branch
          %226 = sbr.rel (%p224) target = $region32
        $region31: #{tpu_custom_call.1} parent=11 // pred_region
          _
        $region32: #{tpu_custom_call.1} parent=11 // pred_fallthru
          _
        // Predicated region
        $region33: #{tpu_custom_call.1} parent=11 // pred_check
          %p227 = pneg %p171
        $region34: #{tpu_custom_call.1} parent=11 // pred_check_branch
          %229 = sbr.rel (%p227) target = $region36
        $region35: #{tpu_custom_call.1} parent=11 // pred_region
          _
        $region36: #{tpu_custom_call.1} parent=11 // pred_fallthru
          _
      $region12: #{tpu_custom_call.1} parent=5 // pred_fallthru
        _
      %p230 = scmp.lt.s32.totalorder %s19, 4
      // Predicated region
      $region37: #{tpu_custom_call.1} parent=5 // pred_check
        %p231 = pneg %p230
      $region38: #{tpu_custom_call.1} parent=5 // pred_check_branch
        %233 = sbr.rel (%p231) target = $region40
      $region39: #{tpu_custom_call.1} parent=5 // pred_region
        // Predicated region
        $region41: #{tpu_custom_call.1} parent=39 // pred_check
          %p234 = pneg %p39
        $region42: #{tpu_custom_call.1} parent=39 // pred_check_branch
          %236 = sbr.rel (%p234) target = $region44
        $region43: #{tpu_custom_call.1} parent=39 // pred_region
          %s237 = sand.u32 %s29, 1
          %s238 = scalar_lea.sflag [#allocation3], %s237
          %s239 = sand.u32 %s29, 1
          %s240 = smul.addr %s239, 128
          %s241 = scalar_lea.vmem [#allocation2], %s240
          %s242 = smul.u32 16, %s19
          %s244 = ssub.s32 2048, 2048
          %245 = vsyncadd %s238, %s244
          %s246 = smul.addr %s242, 128
          %s247 = scalar_lea.hbm %s0, %s246
          %s248 = sshll.u32 %s241, 4
          %s249 = int_to_ptr.vmem [resolvable:$true] %s248
          %254 = dma.hbm_to_vmem [thread:$0]  %s247, 2048, %s249, %s238, 128, 128, 8
        $region44: #{tpu_custom_call.1} parent=39 // pred_fallthru
          _
      $region40: #{tpu_custom_call.1} parent=5 // pred_fallthru
        _
      %p255 = scmp.le.s32.totalorder 1, %s19
      %p256 = scmp.lt.s32.totalorder %s19, 5
      %p257 = pnand %p255, %p256
      %p258 = pneg %p257
      // Predicated region
      $region45: #{tpu_custom_call.1} parent=5 // pred_check
        _
      $region46: #{tpu_custom_call.1} parent=5 // pred_check_branch
        %260 = sbr.rel (%p257) target = $region48
      $region47: #{tpu_custom_call.1} parent=5 // pred_region
        %s261 = ssub.s32 %s19, 1
        %s262 = sand.u32 %s32, 1
        %s263 = scalar_lea.sflag [#allocation3], %s262
        %s264 = sand.u32 %s32, 1
        %s265 = smul.addr %s264, 128
        %s266 = scalar_lea.vmem [#allocation2], %s265
        // Predicated region
        $region49: #{tpu_custom_call.1} parent=47 // pred_check
          %p267 = pneg %p45
        $region50: #{tpu_custom_call.1} parent=47 // pred_check_branch
          %269 = sbr.rel (%p267) target = $region52
        $region51: #{tpu_custom_call.1} parent=47 // pred_region
          %270 = dma.done %s263, 2048
        $region52: #{tpu_custom_call.1} parent=47 // pred_fallthru
          _
        %s271 = sand.u32 %s32, 1
        %s272 = scalar_lea.sflag [#allocation3], %s271
        %s273 = sand.u32 %s32, 1
        %s274 = smul.addr %s273, 128
        %s275 = scalar_lea.vmem [#allocation2], %s274
        %p276 = pneg %p45
        %p277 = pneg %p42
        %p278 = pneg %p66
        %p279 = pneg %p63
        %p280 = pneg %p87
        %p281 = pneg %p84
        %p282 = pneg %p108
        %p283 = pneg %p105
        %p284 = pneg %p129
        %p285 = pneg %p126
        %p286 = pneg %p150
        %p287 = pneg %p147
        %p288 = pneg %p171
        %p289 = pneg %p168
        %p290 = pneg %p197
        %p291 = pneg %p194
        %s292 = sand.u32 %s184, 1
        %s293 = scalar_lea.sflag [#allocation4], %s292
        %s294 = sand.u32 %s184, 1
        %s295 = smul.addr %s294, 128
        %s296 = scalar_lea.vmem [#allocation5], %s295
        %s297 = smul.u32 16, %s24
        %s298 = smul.u32 16, %s24
        %v299 = vld [vmem:[%s266] sm:$0xff]
        %v300 = vld [vmem:[%s266 + $0x8] sm:$0xff]
        %v301 = vld [vmem:[%s266 + $0x10] sm:$0xff]
        %v302 = vld [vmem:[%s266 + $0x18] sm:$0xff]
        %v303 = vld [vmem:[%s266 + $0x20] sm:$0xff]
        %v304 = vld [vmem:[%s266 + $0x28] sm:$0xff]
        %v305 = vld [vmem:[%s266 + $0x30] sm:$0xff]
        %v306 = vld [vmem:[%s266 + $0x38] sm:$0xff]
        %v307 = vld [vmem:[%s266 + $0x40] sm:$0xff]
        %v308 = vld [vmem:[%s266 + $0x48] sm:$0xff]
        %v309 = vld [vmem:[%s266 + $0x50] sm:$0xff]
        %v310 = vld [vmem:[%s266 + $0x58] sm:$0xff]
        %v311 = vld [vmem:[%s266 + $0x60] sm:$0xff]
        %v312 = vld [vmem:[%s266 + $0x68] sm:$0xff]
        %v313 = vld [vmem:[%s266 + $0x70] sm:$0xff]
        %v314 = vld [vmem:[%s266 + $0x78] sm:$0xff]
        %v315 = vld [vmem:[%s1] sm:$0xff]
        %v316 = vld [vmem:[%s1 + $0x8] sm:$0xff]
        %v317 = vld [vmem:[%s1 + $0x10] sm:$0xff]
        %v318 = vld [vmem:[%s1 + $0x18] sm:$0xff]
        %v319 = vld [vmem:[%s1 + $0x20] sm:$0xff]
        %v320 = vld [vmem:[%s1 + $0x28] sm:$0xff]
        %v321 = vld [vmem:[%s1 + $0x30] sm:$0xff]
        %v322 = vld [vmem:[%s1 + $0x38] sm:$0xff]
        %v323 = vld [vmem:[%s1 + $0x40] sm:$0xff]
        %v324 = vld [vmem:[%s1 + $0x48] sm:$0xff]
        %v325 = vld [vmem:[%s1 + $0x50] sm:$0xff]
        %v326 = vld [vmem:[%s1 + $0x58] sm:$0xff]
        %v327 = vld [vmem:[%s1 + $0x60] sm:$0xff]
        %v328 = vld [vmem:[%s1 + $0x68] sm:$0xff]
        %v329 = vld [vmem:[%s1 + $0x70] sm:$0xff]
        %v330 = vld [vmem:[%s1 + $0x78] sm:$0xff]
        %v331 = vld [vmem:[%s2] sm:$0x1]
        %v333 = vlaneseq
        %v334 = vshrl.u32 %v333, 7
        %v335 = vsub.s32 0, %v334
        %v336 = vrot.slane %v331, %v335
        %338 = vmatprep.subr.mxu0 0.0
        %339 = vmatpush1.msra.mxu0 %v330
        %340 = vmatprep.subr.mxu0 0.0
        %341 = vmatpush1.msra.mxu0 %v329
        %342 = vmatprep.subr.mxu0 0.0
        %343 = vmatpush1.msra.mxu0 %v328
        %344 = vmatprep.subr.mxu0 0.0
        %345 = vmatpush1.msra.mxu0 %v327
        %346 = vmatprep.subr.mxu0 0.0
        %347 = vmatpush1.msra.mxu0 %v326
        %348 = vmatprep.subr.mxu0 0.0
        %349 = vmatpush1.msra.mxu0 %v325
        %350 = vmatprep.subr.mxu0 0.0
        %351 = vmatpush1.msra.mxu0 %v324
        %352 = vmatprep.subr.mxu0 0.0
        %353 = vmatpush1.msra.mxu0 %v323
        %354 = vmatprep.subr.mxu0 0.0
        %355 = vmatpush1.msra.mxu0 %v322
        %356 = vmatprep.subr.mxu0 0.0
        %357 = vmatpush1.msra.mxu0 %v321
        %358 = vmatprep.subr.mxu0 0.0
        %359 = vmatpush1.msra.mxu0 %v320
        %360 = vmatprep.subr.mxu0 0.0
        %361 = vmatpush1.msra.mxu0 %v319
        %362 = vmatprep.subr.mxu0 0.0
        %363 = vmatpush1.msra.mxu0 %v318
        %364 = vmatprep.subr.mxu0 0.0
        %365 = vmatpush1.msra.mxu0 %v317
        %366 = vmatprep.subr.mxu0 0.0
        %367 = vmatpush1.msra.mxu0 %v316
        %368 = vmatprep.subr.mxu0 0.0
        %369 = vmatpush1.msra.mxu0 %v315
        %370 = vmatprep.subr.mxu0 0.0
        %371 = vmatpush2.msra.mxu0 0.0
        %372 = vmatprep.subr.mxu0 0.0
        %373 = vmatpush2.msra.mxu0 0.0
        %374 = vmatprep.subr.mxu0 0.0
        %375 = vmatpush2.msra.mxu0 0.0
        %376 = vmatprep.subr.mxu0 0.0
        %377 = vmatpush2.msra.mxu0 0.0
        %378 = vmatprep.subr.mxu0 0.0
        %379 = vmatpush2.msra.mxu0 0.0
        %380 = vmatprep.subr.mxu0 0.0
        %381 = vmatpush2.msra.mxu0 0.0
        %382 = vmatprep.subr.mxu0 0.0
        %383 = vmatpush2.msra.mxu0 0.0
        %384 = vmatprep.subr.mxu0 0.0
        %385 = vmatpush2.msra.mxu0 0.0
        %386 = vmatprep.subr.mxu0 0.0
        %387 = vmatpush2.msra.mxu0 0.0
        %388 = vmatprep.subr.mxu0 0.0
        %389 = vmatpush2.msra.mxu0 0.0
        %390 = vmatprep.subr.mxu0 0.0
        %391 = vmatpush2.msra.mxu0 0.0
        %392 = vmatprep.subr.mxu0 0.0
        %393 = vmatpush2.msra.mxu0 0.0
        %394 = vmatprep.subr.mxu0 0.0
        %395 = vmatpush2.msra.mxu0 0.0
        %396 = vmatprep.subr.mxu0 0.0
        %397 = vmatpush2.msra.mxu0 0.0
        %398 = vmatprep.subr.mxu0 0.0
        %399 = vmatpush2.msra.mxu0 0.0
        %400 = vmatprep.subr.mxu0 0.0
        %401 = vmatpush2.msra.mxu0 0.0
        %402 = vmatprep.mubr.f32.mxu0 0.0
        %403 = vmatmul.mubr.f32.gmra.mxu0 %v299
        %v404 = vpop.f32.mrf.mxu0
        %v405 = vadd.f32 %v336, %v404
        %v406 = vpop.f32.mrf.mxu0
        %407 = vmatprep.mubr.f32.mxu0 0.0
        %408 = vmatmul.mubr.f32.gmra.mxu0 %v300
        %v409 = vpop.f32.mrf.mxu0
        %v410 = vadd.f32 %v336, %v409
        %v411 = vpop.f32.mrf.mxu0
        %412 = vmatprep.mubr.f32.mxu0 0.0
        %413 = vmatmul.mubr.f32.gmra.mxu0 %v301
        %v414 = vpop.f32.mrf.mxu0
        %v415 = vadd.f32 %v336, %v414
        %v416 = vpop.f32.mrf.mxu0
        %417 = vmatprep.mubr.f32.mxu0 0.0
        %418 = vmatmul.mubr.f32.gmra.mxu0 %v302
        %v419 = vpop.f32.mrf.mxu0
        %v420 = vadd.f32 %v336, %v419
        %v421 = vpop.f32.mrf.mxu0
        %422 = vmatprep.mubr.f32.mxu0 0.0
        %423 = vmatmul.mubr.f32.gmra.mxu0 %v303
        %v424 = vpop.f32.mrf.mxu0
        %v425 = vadd.f32 %v336, %v424
        %v426 = vpop.f32.mrf.mxu0
        %427 = vmatprep.mubr.f32.mxu0 0.0
        %428 = vmatmul.mubr.f32.gmra.mxu0 %v304
        %v429 = vpop.f32.mrf.mxu0
        %v430 = vadd.f32 %v336, %v429
        %v431 = vpop.f32.mrf.mxu0
        %432 = vmatprep.mubr.f32.mxu0 0.0
        %433 = vmatmul.mubr.f32.gmra.mxu0 %v305
        %v434 = vpop.f32.mrf.mxu0
        %v435 = vadd.f32 %v336, %v434
        %v436 = vpop.f32.mrf.mxu0
        %437 = vmatprep.mubr.f32.mxu0 0.0
        %438 = vmatmul.mubr.f32.gmra.mxu0 %v306
        %v439 = vpop.f32.mrf.mxu0
        %v440 = vadd.f32 %v336, %v439
        %v441 = vpop.f32.mrf.mxu0
        %442 = vmatprep.mubr.f32.mxu0 0.0
        %443 = vmatmul.mubr.f32.gmra.mxu0 %v307
        %v444 = vpop.f32.mrf.mxu0
        %v445 = vadd.f32 %v336, %v444
        %v446 = vpop.f32.mrf.mxu0
        %447 = vmatprep.mubr.f32.mxu0 0.0
        %448 = vmatmul.mubr.f32.gmra.mxu0 %v308
        %v449 = vpop.f32.mrf.mxu0
        %v450 = vadd.f32 %v336, %v449
        %v451 = vpop.f32.mrf.mxu0
        %452 = vmatprep.mubr.f32.mxu0 0.0
        %453 = vmatmul.mubr.f32.gmra.mxu0 %v309
        %v454 = vpop.f32.mrf.mxu0
        %v455 = vadd.f32 %v336, %v454
        %v456 = vpop.f32.mrf.mxu0
        %457 = vmatprep.mubr.f32.mxu0 0.0
        %458 = vmatmul.mubr.f32.gmra.mxu0 %v310
        %v459 = vpop.f32.mrf.mxu0
        %v460 = vadd.f32 %v336, %v459
        %v461 = vpop.f32.mrf.mxu0
        %462 = vmatprep.mubr.f32.mxu0 0.0
        %463 = vmatmul.mubr.f32.gmra.mxu0 %v311
        %v464 = vpop.f32.mrf.mxu0
        %v465 = vadd.f32 %v336, %v464
        %v466 = vpop.f32.mrf.mxu0
        %467 = vmatprep.mubr.f32.mxu0 0.0
        %468 = vmatmul.mubr.f32.gmra.mxu0 %v312
        %v469 = vpop.f32.mrf.mxu0
        %v470 = vadd.f32 %v336, %v469
        %v471 = vpop.f32.mrf.mxu0
        %472 = vmatprep.mubr.f32.mxu0 0.0
        %473 = vmatmul.mubr.f32.gmra.mxu0 %v313
        %v474 = vpop.f32.mrf.mxu0
        %v475 = vadd.f32 %v336, %v474
        %v476 = vpop.f32.mrf.mxu0
        %477 = vmatprep.mubr.f32.mxu0 0.0
        %478 = vmatmul.mubr.f32.gmra.mxu0 %v314
        %v479 = vpop.f32.mrf.mxu0
        %v480 = vadd.f32 %v336, %v479
        %v481 = vpop.f32.mrf.mxu0
        %482 = vdwg.mxu0
        %v483 = vmax.f32 %v405, 0.0
        %v484 = vmax.f32 %v410, 0.0
        %v485 = vmax.f32 %v415, 0.0
        %v486 = vmax.f32 %v420, 0.0
        %v487 = vmax.f32 %v425, 0.0
        %v488 = vmax.f32 %v430, 0.0
        %v489 = vmax.f32 %v435, 0.0
        %v490 = vmax.f32 %v440, 0.0
        %v491 = vmax.f32 %v445, 0.0
        %v492 = vmax.f32 %v450, 0.0
        %v493 = vmax.f32 %v455, 0.0
        %v494 = vmax.f32 %v460, 0.0
        %v495 = vmax.f32 %v465, 0.0
        %v496 = vmax.f32 %v470, 0.0
        %v497 = vmax.f32 %v475, 0.0
        %v498 = vmax.f32 %v480, 0.0
        %v499 = vld [vmem:[%s3] sm:$0xf]
        %v500 = vld [vmem:[%s4] sm:$0x1]
        %v502 = vlaneseq
        %v503 = vshrl.u32 %v502, 7
        %v504 = vsub.s32 0, %v503
        %v505 = vrot.slane %v500, %v504
        %vm507 = vcmask 31744
        %v509 = vsel %vm507, %v483, 0
        %v512 = vsel %vm507, %v484, 0
        %v515 = vsel %vm507, %v485, 0
        %v518 = vsel %vm507, %v486, 0
        %v521 = vsel %vm507, %v487, 0
        %v524 = vsel %vm507, %v488, 0
        %v527 = vsel %vm507, %v489, 0
        %v530 = vsel %vm507, %v490, 0
        %v533 = vsel %vm507, %v491, 0
        %v536 = vsel %vm507, %v492, 0
        %v539 = vsel %vm507, %v493, 0
        %v542 = vsel %vm507, %v494, 0
        %v545 = vsel %vm507, %v495, 0
        %v548 = vsel %vm507, %v496, 0
        %v551 = vsel %vm507, %v497, 0
        %v554 = vsel %vm507, %v498, 0
        %vm556 = vcmask 1043456
        %v558 = vsel %vm556, %v499, 0
        %560 = vmatprep.subr.mxu0 0.0
        %561 = vmatpush1.msra.mxu0 0.0
        %562 = vmatprep.subr.mxu0 0.0
        %563 = vmatpush1.msra.mxu0 0.0
        %564 = vmatprep.subr.mxu0 0.0
        %565 = vmatpush1.msra.mxu0 0.0
        %566 = vmatprep.subr.mxu0 0.0
        %567 = vmatpush1.msra.mxu0 0.0
        %568 = vmatprep.subr.mxu0 0.0
        %569 = vmatpush1.msra.mxu0 0.0
        %570 = vmatprep.subr.mxu0 0.0
        %571 = vmatpush1.msra.mxu0 0.0
        %572 = vmatprep.subr.mxu0 0.0
        %573 = vmatpush1.msra.mxu0 0.0
        %574 = vmatprep.subr.mxu0 0.0
        %575 = vmatpush1.msra.mxu0 0.0
        %576 = vmatprep.subr.mxu0 0.0
        %577 = vmatpush1.msra.mxu0 0.0
        %578 = vmatprep.subr.mxu0 0.0
        %579 = vmatpush1.msra.mxu0 0.0
        %580 = vmatprep.subr.mxu0 0.0
        %581 = vmatpush1.msra.mxu0 0.0
        %582 = vmatprep.subr.mxu0 0.0
        %583 = vmatpush1.msra.mxu0 0.0
        %584 = vmatprep.subr.mxu0 0.0
        %585 = vmatpush1.msra.mxu0 0.0
        %586 = vmatprep.subr.mxu0 0.0
        %587 = vmatpush1.msra.mxu0 0.0
        %588 = vmatprep.subr.mxu0 0.0
        %589 = vmatpush1.msra.mxu0 0.0
        %590 = vmatprep.subr.mxu0 0.0
        %591 = vmatpush1.msra.mxu0 %v558
        %592 = vmatprep.subr.mxu0 0.0
        %593 = vmatpush2.msra.mxu0 0.0
        %594 = vmatprep.subr.mxu0 0.0
        %595 = vmatpush2.msra.mxu0 0.0
        %596 = vmatprep.subr.mxu0 0.0
        %597 = vmatpush2.msra.mxu0 0.0
        %598 = vmatprep.subr.mxu0 0.0
        %599 = vmatpush2.msra.mxu0 0.0
        %600 = vmatprep.subr.mxu0 0.0
        %601 = vmatpush2.msra.mxu0 0.0
        %602 = vmatprep.subr.mxu0 0.0
        %603 = vmatpush2.msra.mxu0 0.0
        %604 = vmatprep.subr.mxu0 0.0
        %605 = vmatpush2.msra.mxu0 0.0
        %606 = vmatprep.subr.mxu0 0.0
        %607 = vmatpush2.msra.mxu0 0.0
        %608 = vmatprep.subr.mxu0 0.0
        %609 = vmatpush2.msra.mxu0 0.0
        %610 = vmatprep.subr.mxu0 0.0
        %611 = vmatpush2.msra.mxu0 0.0
        %612 = vmatprep.subr.mxu0 0.0
        %613 = vmatpush2.msra.mxu0 0.0
        %614 = vmatprep.subr.mxu0 0.0
        %615 = vmatpush2.msra.mxu0 0.0
        %616 = vmatprep.subr.mxu0 0.0
        %617 = vmatpush2.msra.mxu0 0.0
        %618 = vmatprep.subr.mxu0 0.0
        %619 = vmatpush2.msra.mxu0 0.0
        %620 = vmatprep.subr.mxu0 0.0
        %621 = vmatpush2.msra.mxu0 0.0
        %622 = vmatprep.subr.mxu0 0.0
        %623 = vmatpush2.msra.mxu0 0.0
        %624 = vmatprep.mubr.f32.mxu0 0.0
        %625 = vmatmul.mubr.f32.gmra.mxu0 %v509
        %v626 = vpop.f32.mrf.mxu0
        %v627 = vadd.f32 %v505, %v626
        %v628 = vpop.f32.mrf.mxu0
        %629 = vmatprep.mubr.f32.mxu0 0.0
        %630 = vmatmul.mubr.f32.gmra.mxu0 %v512
        %v631 = vpop.f32.mrf.mxu0
        %v632 = vadd.f32 %v505, %v631
        %v633 = vpop.f32.mrf.mxu0
        %634 = vmatprep.mubr.f32.mxu0 0.0
        %635 = vmatmul.mubr.f32.gmra.mxu0 %v515
        %v636 = vpop.f32.mrf.mxu0
        %v637 = vadd.f32 %v505, %v636
        %v638 = vpop.f32.mrf.mxu0
        %639 = vmatprep.mubr.f32.mxu0 0.0
        %640 = vmatmul.mubr.f32.gmra.mxu0 %v518
        %v641 = vpop.f32.mrf.mxu0
        %v642 = vadd.f32 %v505, %v641
        %v643 = vpop.f32.mrf.mxu0
        %644 = vmatprep.mubr.f32.mxu0 0.0
        %645 = vmatmul.mubr.f32.gmra.mxu0 %v521
        %v646 = vpop.f32.mrf.mxu0
        %v647 = vadd.f32 %v505, %v646
        %v648 = vpop.f32.mrf.mxu0
        %649 = vmatprep.mubr.f32.mxu0 0.0
        %650 = vmatmul.mubr.f32.gmra.mxu0 %v524
        %v651 = vpop.f32.mrf.mxu0
        %v652 = vadd.f32 %v505, %v651
        %v653 = vpop.f32.mrf.mxu0
        %654 = vmatprep.mubr.f32.mxu0 0.0
        %655 = vmatmul.mubr.f32.gmra.mxu0 %v527
        %v656 = vpop.f32.mrf.mxu0
        %v657 = vadd.f32 %v505, %v656
        %v658 = vpop.f32.mrf.mxu0
        %659 = vmatprep.mubr.f32.mxu0 0.0
        %660 = vmatmul.mubr.f32.gmra.mxu0 %v530
        %v661 = vpop.f32.mrf.mxu0
        %v662 = vadd.f32 %v505, %v661
        %v663 = vpop.f32.mrf.mxu0
        %664 = vmatprep.mubr.f32.mxu0 0.0
        %665 = vmatmul.mubr.f32.gmra.mxu0 %v533
        %v666 = vpop.f32.mrf.mxu0
        %v667 = vadd.f32 %v505, %v666
        %v668 = vpop.f32.mrf.mxu0
        %669 = vmatprep.mubr.f32.mxu0 0.0
        %670 = vmatmul.mubr.f32.gmra.mxu0 %v536
        %v671 = vpop.f32.mrf.mxu0
        %v672 = vadd.f32 %v505, %v671
        %v673 = vpop.f32.mrf.mxu0
        %674 = vmatprep.mubr.f32.mxu0 0.0
        %675 = vmatmul.mubr.f32.gmra.mxu0 %v539
        %v676 = vpop.f32.mrf.mxu0
        %v677 = vadd.f32 %v505, %v676
        %v678 = vpop.f32.mrf.mxu0
        %679 = vmatprep.mubr.f32.mxu0 0.0
        %680 = vmatmul.mubr.f32.gmra.mxu0 %v542
        %v681 = vpop.f32.mrf.mxu0
        %v682 = vadd.f32 %v505, %v681
        %v683 = vpop.f32.mrf.mxu0
        %684 = vmatprep.mubr.f32.mxu0 0.0
        %685 = vmatmul.mubr.f32.gmra.mxu0 %v545
        %v686 = vpop.f32.mrf.mxu0
        %v687 = vadd.f32 %v505, %v686
        %v688 = vpop.f32.mrf.mxu0
        %689 = vmatprep.mubr.f32.mxu0 0.0
        %690 = vmatmul.mubr.f32.gmra.mxu0 %v548
        %v691 = vpop.f32.mrf.mxu0
        %v692 = vadd.f32 %v505, %v691
        %v693 = vpop.f32.mrf.mxu0
        %694 = vmatprep.mubr.f32.mxu0 0.0
        %695 = vmatmul.mubr.f32.gmra.mxu0 %v551
        %v696 = vpop.f32.mrf.mxu0
        %v697 = vadd.f32 %v505, %v696
        %v698 = vpop.f32.mrf.mxu0
        %699 = vmatprep.mubr.f32.mxu0 0.0
        %700 = vmatmul.mubr.f32.gmra.mxu0 %v554
        %v701 = vpop.f32.mrf.mxu0
        %v702 = vadd.f32 %v505, %v701
        %v703 = vpop.f32.mrf.mxu0
        %704 = vdwg.mxu0
        %v705 = vmax.f32 %v627, 0.0
        %v706 = vmax.f32 %v632, 0.0
        %v707 = vmax.f32 %v637, 0.0
        %v708 = vmax.f32 %v642, 0.0
        %v709 = vmax.f32 %v647, 0.0
        %v710 = vmax.f32 %v652, 0.0
        %v711 = vmax.f32 %v657, 0.0
        %v712 = vmax.f32 %v662, 0.0
        %v713 = vmax.f32 %v667, 0.0
        %v714 = vmax.f32 %v672, 0.0
        %v715 = vmax.f32 %v677, 0.0
        %v716 = vmax.f32 %v682, 0.0
        %v717 = vmax.f32 %v687, 0.0
        %v718 = vmax.f32 %v692, 0.0
        %v719 = vmax.f32 %v697, 0.0
        %v720 = vmax.f32 %v702, 0.0
        %v721 = vld [vmem:[%s5] sm:$0xf]
        %v722 = vld [vmem:[%s6] sm:$0x1]
        %v724 = vlaneseq
        %v725 = vshrl.u32 %v724, 7
        %v726 = vsub.s32 0, %v725
        %v727 = vrot.slane %v722, %v726
        %v730 = vsel %vm507, %v705, 0
        %v733 = vsel %vm507, %v706, 0
        %v736 = vsel %vm507, %v707, 0
        %v739 = vsel %vm507, %v708, 0
        %v742 = vsel %vm507, %v709, 0
        %v745 = vsel %vm507, %v710, 0
        %v748 = vsel %vm507, %v711, 0
        %v751 = vsel %vm507, %v712, 0
        %v754 = vsel %vm507, %v713, 0
        %v757 = vsel %vm507, %v714, 0
        %v760 = vsel %vm507, %v715, 0
        %v763 = vsel %vm507, %v716, 0
        %v766 = vsel %vm507, %v717, 0
        %v769 = vsel %vm507, %v718, 0
        %v772 = vsel %vm507, %v719, 0
        %v775 = vsel %vm507, %v720, 0
        %v778 = vsel %vm556, %v721, 0
        %780 = vmatprep.subr.mxu0 0.0
        %781 = vmatpush1.msra.mxu0 0.0
        %782 = vmatprep.subr.mxu0 0.0
        %783 = vmatpush1.msra.mxu0 0.0
        %784 = vmatprep.subr.mxu0 0.0
        %785 = vmatpush1.msra.mxu0 0.0
        %786 = vmatprep.subr.mxu0 0.0
        %787 = vmatpush1.msra.mxu0 0.0
        %788 = vmatprep.subr.mxu0 0.0
        %789 = vmatpush1.msra.mxu0 0.0
        %790 = vmatprep.subr.mxu0 0.0
        %791 = vmatpush1.msra.mxu0 0.0
        %792 = vmatprep.subr.mxu0 0.0
        %793 = vmatpush1.msra.mxu0 0.0
        %794 = vmatprep.subr.mxu0 0.0
        %795 = vmatpush1.msra.mxu0 0.0
        %796 = vmatprep.subr.mxu0 0.0
        %797 = vmatpush1.msra.mxu0 0.0
        %798 = vmatprep.subr.mxu0 0.0
        %799 = vmatpush1.msra.mxu0 0.0
        %800 = vmatprep.subr.mxu0 0.0
        %801 = vmatpush1.msra.mxu0 0.0
        %802 = vmatprep.subr.mxu0 0.0
        %803 = vmatpush1.msra.mxu0 0.0
        %804 = vmatprep.subr.mxu0 0.0
        %805 = vmatpush1.msra.mxu0 0.0
        %806 = vmatprep.subr.mxu0 0.0
        %807 = vmatpush1.msra.mxu0 0.0
        %808 = vmatprep.subr.mxu0 0.0
        %809 = vmatpush1.msra.mxu0 0.0
        %810 = vmatprep.subr.mxu0 0.0
        %811 = vmatpush1.msra.mxu0 %v778
        %812 = vmatprep.subr.mxu0 0.0
        %813 = vmatpush2.msra.mxu0 0.0
        %814 = vmatprep.subr.mxu0 0.0
        %815 = vmatpush2.msra.mxu0 0.0
        %816 = vmatprep.subr.mxu0 0.0
        %817 = vmatpush2.msra.mxu0 0.0
        %818 = vmatprep.subr.mxu0 0.0
        %819 = vmatpush2.msra.mxu0 0.0
        %820 = vmatprep.subr.mxu0 0.0
        %821 = vmatpush2.msra.mxu0 0.0
        %822 = vmatprep.subr.mxu0 0.0
        %823 = vmatpush2.msra.mxu0 0.0
        %824 = vmatprep.subr.mxu0 0.0
        %825 = vmatpush2.msra.mxu0 0.0
        %826 = vmatprep.subr.mxu0 0.0
        %827 = vmatpush2.msra.mxu0 0.0
        %828 = vmatprep.subr.mxu0 0.0
        %829 = vmatpush2.msra.mxu0 0.0
        %830 = vmatprep.subr.mxu0 0.0
        %831 = vmatpush2.msra.mxu0 0.0
        %832 = vmatprep.subr.mxu0 0.0
        %833 = vmatpush2.msra.mxu0 0.0
        %834 = vmatprep.subr.mxu0 0.0
        %835 = vmatpush2.msra.mxu0 0.0
        %836 = vmatprep.subr.mxu0 0.0
        %837 = vmatpush2.msra.mxu0 0.0
        %838 = vmatprep.subr.mxu0 0.0
        %839 = vmatpush2.msra.mxu0 0.0
        %840 = vmatprep.subr.mxu0 0.0
        %841 = vmatpush2.msra.mxu0 0.0
        %842 = vmatprep.subr.mxu0 0.0
        %843 = vmatpush2.msra.mxu0 0.0
        %844 = vmatprep.mubr.f32.mxu0 0.0
        %845 = vmatmul.mubr.f32.gmra.mxu0 %v730
        %v846 = vpop.f32.mrf.mxu0
        %v847 = vadd.f32 %v727, %v846
        %v848 = vpop.f32.mrf.mxu0
        %849 = vmatprep.mubr.f32.mxu0 0.0
        %850 = vmatmul.mubr.f32.gmra.mxu0 %v733
        %v851 = vpop.f32.mrf.mxu0
        %v852 = vadd.f32 %v727, %v851
        %v853 = vpop.f32.mrf.mxu0
        %854 = vmatprep.mubr.f32.mxu0 0.0
        %855 = vmatmul.mubr.f32.gmra.mxu0 %v736
        %v856 = vpop.f32.mrf.mxu0
        %v857 = vadd.f32 %v727, %v856
        %v858 = vpop.f32.mrf.mxu0
        %859 = vmatprep.mubr.f32.mxu0 0.0
        %860 = vmatmul.mubr.f32.gmra.mxu0 %v739
        %v861 = vpop.f32.mrf.mxu0
        %v862 = vadd.f32 %v727, %v861
        %v863 = vpop.f32.mrf.mxu0
        %864 = vmatprep.mubr.f32.mxu0 0.0
        %865 = vmatmul.mubr.f32.gmra.mxu0 %v742
        %v866 = vpop.f32.mrf.mxu0
        %v867 = vadd.f32 %v727, %v866
        %v868 = vpop.f32.mrf.mxu0
        %869 = vmatprep.mubr.f32.mxu0 0.0
        %870 = vmatmul.mubr.f32.gmra.mxu0 %v745
        %v871 = vpop.f32.mrf.mxu0
        %v872 = vadd.f32 %v727, %v871
        %v873 = vpop.f32.mrf.mxu0
        %874 = vmatprep.mubr.f32.mxu0 0.0
        %875 = vmatmul.mubr.f32.gmra.mxu0 %v748
        %v876 = vpop.f32.mrf.mxu0
        %v877 = vadd.f32 %v727, %v876
        %v878 = vpop.f32.mrf.mxu0
        %879 = vmatprep.mubr.f32.mxu0 0.0
        %880 = vmatmul.mubr.f32.gmra.mxu0 %v751
        %v881 = vpop.f32.mrf.mxu0
        %v882 = vadd.f32 %v727, %v881
        %v883 = vpop.f32.mrf.mxu0
        %884 = vmatprep.mubr.f32.mxu0 0.0
        %885 = vmatmul.mubr.f32.gmra.mxu0 %v754
        %v886 = vpop.f32.mrf.mxu0
        %v887 = vadd.f32 %v727, %v886
        %v888 = vpop.f32.mrf.mxu0
        %889 = vmatprep.mubr.f32.mxu0 0.0
        %890 = vmatmul.mubr.f32.gmra.mxu0 %v757
        %v891 = vpop.f32.mrf.mxu0
        %v892 = vadd.f32 %v727, %v891
        %v893 = vpop.f32.mrf.mxu0
        %894 = vmatprep.mubr.f32.mxu0 0.0
        %895 = vmatmul.mubr.f32.gmra.mxu0 %v760
        %v896 = vpop.f32.mrf.mxu0
        %v897 = vadd.f32 %v727, %v896
        %v898 = vpop.f32.mrf.mxu0
        %899 = vmatprep.mubr.f32.mxu0 0.0
        %900 = vmatmul.mubr.f32.gmra.mxu0 %v763
        %v901 = vpop.f32.mrf.mxu0
        %v902 = vadd.f32 %v727, %v901
        %v903 = vpop.f32.mrf.mxu0
        %904 = vmatprep.mubr.f32.mxu0 0.0
        %905 = vmatmul.mubr.f32.gmra.mxu0 %v766
        %v906 = vpop.f32.mrf.mxu0
        %v907 = vadd.f32 %v727, %v906
        %v908 = vpop.f32.mrf.mxu0
        %909 = vmatprep.mubr.f32.mxu0 0.0
        %910 = vmatmul.mubr.f32.gmra.mxu0 %v769
        %v911 = vpop.f32.mrf.mxu0
        %v912 = vadd.f32 %v727, %v911
        %v913 = vpop.f32.mrf.mxu0
        %914 = vmatprep.mubr.f32.mxu0 0.0
        %915 = vmatmul.mubr.f32.gmra.mxu0 %v772
        %v916 = vpop.f32.mrf.mxu0
        %v917 = vadd.f32 %v727, %v916
        %v918 = vpop.f32.mrf.mxu0
        %919 = vmatprep.mubr.f32.mxu0 0.0
        %920 = vmatmul.mubr.f32.gmra.mxu0 %v775
        %v921 = vpop.f32.mrf.mxu0
        %v922 = vadd.f32 %v727, %v921
        %v923 = vpop.f32.mrf.mxu0
        %924 = vdwg.mxu0
        %925 = vst [vmem:[%s296] sm:$0xff] %v847
        %926 = vst [vmem:[%s296 + $0x8] sm:$0xff] %v852
        %927 = vst [vmem:[%s296 + $0x10] sm:$0xff] %v857
        %928 = vst [vmem:[%s296 + $0x18] sm:$0xff] %v862
        %929 = vst [vmem:[%s296 + $0x20] sm:$0xff] %v867
        %930 = vst [vmem:[%s296 + $0x28] sm:$0xff] %v872
        %931 = vst [vmem:[%s296 + $0x30] sm:$0xff] %v877
        %932 = vst [vmem:[%s296 + $0x38] sm:$0xff] %v882
        %933 = vst [vmem:[%s296 + $0x40] sm:$0xff] %v887
        %934 = vst [vmem:[%s296 + $0x48] sm:$0xff] %v892
        %935 = vst [vmem:[%s296 + $0x50] sm:$0xff] %v897
        %936 = vst [vmem:[%s296 + $0x58] sm:$0xff] %v902
        %937 = vst [vmem:[%s296 + $0x60] sm:$0xff] %v907
        %938 = vst [vmem:[%s296 + $0x68] sm:$0xff] %v912
        %939 = vst [vmem:[%s296 + $0x70] sm:$0xff] %v917
        %940 = vst [vmem:[%s296 + $0x78] sm:$0xff] %v922
        %s941 = sand.u32 %s184, 1
        %s942 = scalar_lea.sflag [#allocation4], %s941
        %s943 = sand.u32 %s184, 1
        %s944 = smul.addr %s943, 128
        %s945 = scalar_lea.vmem [#allocation5], %s944
        // Predicated region
        $region53: #{tpu_custom_call.1} parent=47 // pred_check
          %p946 = pneg %p194
        $region54: #{tpu_custom_call.1} parent=47 // pred_check_branch
          %948 = sbr.rel (%p946) target = $region56
        $region55: #{tpu_custom_call.1} parent=47 // pred_region
          %s949 = smul.u32 16, %s24
          %s951 = ssub.s32 2048, 2048
          %952 = vsyncadd %s942, %s951
          %s953 = smul.addr %s949, 128
          %s954 = scalar_lea.hbm %s7, %s953
          %s955 = sshll.u32 %s945, 4
          %s956 = int_to_ptr.vmem [resolvable:$true] %s955
          %961 = dma.vmem_to_hbm [thread:$0]  %s956, 2048, %s954, %s942, 128, 128, 8
        $region56: #{tpu_custom_call.1} parent=47 // pred_fallthru
          _
      $region48: #{tpu_custom_call.1} parent=5 // pred_fallthru
        _
      %p962 = scmp.le.s32.totalorder 2, %s19
      // Predicated region
      $region57: #{tpu_custom_call.1} parent=5 // pred_check
        %p963 = pneg %p962
      $region58: #{tpu_custom_call.1} parent=5 // pred_check_branch
        %965 = sbr.rel (%p963) target = $region60
      $region59: #{tpu_custom_call.1} parent=5 // pred_region
        %s966 = ssub.s32 %s19, 2
        // Predicated region
        $region61: #{tpu_custom_call.1} parent=59 // pred_check
          %p967 = pneg %p200
        $region62: #{tpu_custom_call.1} parent=59 // pred_check_branch
          %969 = sbr.rel (%p967) target = $region64
        $region63: #{tpu_custom_call.1} parent=59 // pred_region
          %s970 = sand.u32 %s185, 1
          %s971 = scalar_lea.sflag [#allocation4], %s970
          %s972 = sand.u32 %s185, 1
          %s973 = smul.addr %s972, 128
          %s974 = scalar_lea.vmem [#allocation5], %s973
          %975 = dma.done %s971, 2048
        $region64: #{tpu_custom_call.1} parent=59 // pred_fallthru
          _
      $region60: #{tpu_custom_call.1} parent=5 // pred_fallthru
        _
    $region6: #{tpu_custom_call.1} parent=1 // loop_footer
      %s23 = sadd.s32 1, %s19
    $region7: #{tpu_custom_call.1} parent=1 // loop_footer_branch
      %18 = sbr.rel target = $region3
    $region8: #{tpu_custom_call.1} parent=1 // loop_exit
      _
    %976 = vsyncpa [#allocation3], 1
    %s977 = scalar_lea.sflag [#allocation3], 1
    %978 = vsyncpa %s977, 1
    %979 = vsyncpa [#allocation4], 1
    %s980 = scalar_lea.sflag [#allocation4], 1
    %981 = vsyncpa %s980, 1

</llo_original>
